<compile_context>
chip_gen: v6e
topology: v6e:2x2x1
jax: 0.10.0
libtpu: 0.0.40
codegen_flags: <defaults>
</compile_context>

<pallas_src>
import functools

import numpy as np
import jax
import jax.numpy as jnp
from jax.experimental import pallas as pl
from jax.experimental.pallas import tpu as pltpu


# Synthetic tree (stands in for the CSV-derived Parent->Children dict).
TREE = {
    "region_a": ["a1", "a2"],
    "region_b": ["b1", "b2", "b3"],
    "region_c": ["c1", "c2"],
}
NUM_CHILDREN = [len(v) for v in TREE.values()]   # [2, 3, 2]
P = len(NUM_CHILDREN)                            # parents
CMAX = max(NUM_CHILDREN)                         # max children per parent
CBLK = 1 + CMAX                                  # lanes per parent group (parent + padded children)
NPAD = 128                                       # lane-dense decision width
assert P * CBLK <= NPAD


def mendt_fused_kernel(x_ref, wp_ref, bp_ref, wd_ref, bd_ref,
                       gsel_ref, gbias_ref, out_ref):
    """Whole tree head for one batch tile.

    x_ref     : (TB, H)        shared CLS features
    wp_ref    : (H, PHPAD)     per-parent process weights stacked along N (zero padded)
    bp_ref    : (1, PHPAD)     stacked process biases
    wd_ref    : (PHPAD, NPAD)  block-diagonal fused [parent | children] decision weights
    bd_ref    : (1, NPAD)      fused decision biases
    gsel_ref  : (NPAD, NPAD)   constant selector: parent lane -> its valid child lanes
    gbias_ref : (1, NPAD)      constant: 1.0 on parent lanes, 0.0 elsewhere
    out_ref   : (TB, NPAD)     lane p*CBLK = parent p decision,
                               lanes p*CBLK+1.. = gated child decisions,
                               padded/invalid lanes = 0
    """
    x = x_ref[...]                                                      # (TB, H)

    # process_p = ReLU(x @ Wp_p + bp_p), all parents at once (Dropout = eval identity).
    proc = jnp.dot(x, wp_ref[...], preferred_element_type=jnp.float32) + bp_ref[...]
    proc = jnp.maximum(proc, 0.0)                                       # (TB, PHPAD)

    # Fused parent + child decision logits (block-diagonal weights).
    logits = jnp.dot(proc, wd_ref[...],
                     preferred_element_type=jnp.float32) + bd_ref[...]  # (TB, NPAD)
    # sigmoid; exp -> EUP.  approx=False keeps exact 1/(1+e^-x) for the 1e-5 check;
    # approx=True would move the divide onto the EUP vrcp slot as well.
    dec = pl.reciprocal(1.0 + jnp.exp(-logits), approx=False)

    # gate = parent decision broadcast onto its child lanes, 1.0 on parent
    # lanes, 0.0 on padded/invalid lanes -- a constant selector matmul (MXU is
    # idle here) + one add.  out = dec * gate fuses the parent gating AND the
    # padded-lane masking in a single VALU multiply.
    gate = jnp.dot(dec, gsel_ref[...],
                   preferred_element_type=jnp.float32) + gbias_ref[...]
    out_ref[...] = (dec * gate).astype(out_ref.dtype)


def pack_params(params, H):
    """Packs per-parent params into lane-dense fused layouts.

    Runs ONCE at init time (hoisted out of the forward); host-side numpy, no
    per-call XLA .at[].set chains.
    """
    PH = P * H
    PHPAD = ((PH + 127) // 128) * 128

    wp = np.zeros((H, PHPAD), np.float32)
    bp = np.zeros((1, PHPAD), np.float32)
    wd = np.zeros((PHPAD, NPAD), np.float32)
    bd = np.zeros((1, NPAD), np.float32)
    gsel = np.zeros((NPAD, NPAD), np.float32)
    gbias = np.zeros((1, NPAD), np.float32)

    p_wp = np.asarray(params["wp"]);  p_bp = np.asarray(params["bp"])
    p_wdp = np.asarray(params["wdp"]); p_bdp = np.asarray(params["bdp"])
    p_wc = np.asarray(params["wc"]);  p_bc = np.asarray(params["bc"])

    for p in range(P):
        nc = NUM_CHILDREN[p]
        r0, c0 = p * H, p * CBLK
        wp[:, r0:r0 + H] = p_wp[p]
        bp[0, r0:r0 + H] = p_bp[p, 0]
        wd[r0:r0 + H, c0] = p_wdp[p, :, 0]
        wd[r0:r0 + H, c0 + 1:c0 + 1 + nc] = p_wc[p, :, :nc]
        bd[0, c0] = p_bdp[p, 0, 0]
        bd[0, c0 + 1:c0 + 1 + nc] = p_bc[p, 0, :nc]
        gsel[c0, c0 + 1:c0 + 1 + nc] = 1.0     # parent lane -> its valid child lanes
        gbias[0, c0] = 1.0                     # parent lanes pass through

    return {"wp": jnp.asarray(wp), "bp": jnp.asarray(bp),
            "wd": jnp.asarray(wd), "bd": jnp.asarray(bd),
            "gsel": jnp.asarray(gsel), "gbias": jnp.asarray(gbias)}


def _pick_batch_tile(B):
    """Batch tile: >=2 grid steps when B > 8 (v7x megacore), multiple of 8,
    capped at 512 to amortize the ~0.35us per-step overhead."""
    if B <= 8:
        return B, 1
    tb = min(512, max(8, (((B + 1) // 2) // 8) * 8))
    nb = -(-B // tb)
    return tb, nb


@jax.jit
def mendt_forward(x, packed):
    """Runs the tree head. x: (B, H) float32. Returns (child_dec, parent_dec)."""
    B, H = x.shape
    PHPAD = packed["wp"].shape[1]

    TB, nb = _pick_batch_tile(B)
    Bp = TB * nb
    if Bp != B:                                    # arbitrary B: pad, slice after
        x = jnp.pad(x, ((0, Bp - B), (0, 0)))

    out = pl.pallas_call(
        mendt_fused_kernel,
        out_shape=jax.ShapeDtypeStruct((Bp, NPAD), jnp.float32),
        grid=(nb,),
        in_specs=[
            pl.BlockSpec((TB, H), lambda b: (b, 0)),          # x (batch-tiled)
            pl.BlockSpec((H, PHPAD), lambda b: (0, 0)),       # stacked process W
            pl.BlockSpec((1, PHPAD), lambda b: (0, 0)),       # stacked process b
            pl.BlockSpec((PHPAD, NPAD), lambda b: (0, 0)),    # fused decision W
            pl.BlockSpec((1, NPAD), lambda b: (0, 0)),        # fused decision b
            pl.BlockSpec((NPAD, NPAD), lambda b: (0, 0)),     # const gating selector
            pl.BlockSpec((1, NPAD), lambda b: (0, 0)),        # const parent-lane bias
        ],
        out_specs=pl.BlockSpec((TB, NPAD), lambda b: (b, 0)),
        compiler_params=pltpu.CompilerParams(
            dimension_semantics=("parallel",)),               # default VMEM limit: leave headroom
    )(x, packed["wp"], packed["bp"], packed["wd"], packed["bd"],
      packed["gsel"], packed["gbias"])

    out = out[:B]
    parent_decisions = out[:, np.arange(P) * CBLK]            # (B, P), tree order
    child_cols = [out[:, p * CBLK + 1: p * CBLK + 1 + n]
                  for p, n in enumerate(NUM_CHILDREN)]
    child_decisions = jnp.concatenate(child_cols, axis=1)     # (B, sum(children))
    return child_decisions, parent_decisions


def ref_forward(x, params):
    """Pure-JAX reference matching the PyTorch module (eval-mode dropout)."""
    child, parent = [], []
    for p, n in enumerate(NUM_CHILDREN):
        proc = jnp.maximum(x @ params["wp"][p] + params["bp"][p, 0], 0.0)
        pd = jax.nn.sigmoid(proc @ params["wdp"][p] + params["bdp"][p, 0])
        parent.append(pd)
        cd = jax.nn.sigmoid(proc @ params["wc"][p, :, :n] + params["bc"][p, 0, :n]) * pd
        child.append(cd)
    return jnp.concatenate(child, axis=1), jnp.concatenate(parent, axis=1)


def init_params(key, H):
    ks = jax.random.split(key, 6)
    scale = 1.0 / np.sqrt(H)
    return {
        "wp":  jax.random.uniform(ks[0], (P, H, H), jnp.float32, -scale, scale),
        "bp":  jax.random.uniform(ks[1], (P, 1, H), jnp.float32, -scale, scale),
        "wdp": jax.random.uniform(ks[2], (P, H, 1), jnp.float32, -scale, scale),
        "bdp": jax.random.uniform(ks[3], (P, 1, 1), jnp.float32, -scale, scale),
        "wc":  jax.random.uniform(ks[4], (P, H, CMAX), jnp.float32, -scale, scale),
        "bc":  jax.random.uniform(ks[5], (P, 1, CMAX), jnp.float32, -scale, scale),
    }


if __name__ == "__main__":
    B, S, H, VOCAB = 2, 8, 32, 50
    key = jax.random.PRNGKey(0)
    k_ids, k_emb, k_par = jax.random.split(key, 3)

    input_ids = jax.random.randint(k_ids, (B, S), 0, VOCAB)
    attention_mask = jnp.ones((B, S), dtype=jnp.int32)

    # TODO(synk): the HuggingFace base_model has no Pallas equivalent here; a
    # deterministic embedding-table CLS lookup stands in for
    # base_model(...).last_hidden_state[:, 0, :].
    emb_table = jax.random.normal(k_emb, (VOCAB, H), jnp.float32)
    x = emb_table[input_ids[:, 0]]                    # (B, H) "CLS" features

    params = init_params(k_par, H)
    packed = pack_params(params, H)                   # packed ONCE, outside forward

    child_dec, parent_dec = mendt_forward(x, packed)
    child_dec = jax.block_until_ready(child_dec)
    parent_dec = jax.block_until_ready(parent_dec)

    child_ref, parent_ref = ref_forward(x, params)
    assert child_dec.shape == (B, sum(NUM_CHILDREN))
    assert parent_dec.shape == (B, P)
    np.testing.assert_allclose(np.asarray(child_dec), np.asarray(child_ref),
                               rtol=1e-5, atol=1e-5)
    np.testing.assert_allclose(np.asarray(parent_dec), np.asarray(parent_ref),
                               rtol=1e-5, atol=1e-5)
    print("KERNEL_OK")
</pallas_src>

<mosaic_0001>
module attributes {stable_mosaic.version = 11 : i64} {
  func.func @mendt_fused_kernel(%arg0: i32, %arg1: memref<2x32xf32, #tpu.memory_space<vmem>>, %arg2: memref<32x128xf32, #tpu.memory_space<vmem>>, %arg3: memref<1x128xf32, #tpu.memory_space<vmem>>, %arg4: memref<128x128xf32, #tpu.memory_space<vmem>>, %arg5: memref<1x128xf32, #tpu.memory_space<vmem>>, %arg6: memref<128x128xf32, #tpu.memory_space<vmem>>, %arg7: memref<1x128xf32, #tpu.memory_space<vmem>>, %arg8: memref<2x128xf32, #tpu.memory_space<vmem>>) attributes {dimension_semantics = [#tpu.dimension_semantics<parallel>], iteration_bounds = array<i64: 1>, scalar_prefetch = 0 : i64, scratch_operands = 0 : i64, tpu.core_type = #tpu.core_type<tc>, window_params = [{transform_indices = @transform_0, window_bounds = array<i64: 2, 32>}, {pipeline_mode = #tpu.pipeline_mode<synchronous>, transform_indices = @transform_1, window_bounds = array<i64: 32, 128>}, {pipeline_mode = #tpu.pipeline_mode<synchronous>, transform_indices = @transform_2, window_bounds = array<i64: 1, 128>}, {pipeline_mode = #tpu.pipeline_mode<synchronous>, transform_indices = @transform_3, window_bounds = array<i64: 128, 128>}, {pipeline_mode = #tpu.pipeline_mode<synchronous>, transform_indices = @transform_4, window_bounds = array<i64: 1, 128>}, {pipeline_mode = #tpu.pipeline_mode<synchronous>, transform_indices = @transform_5, window_bounds = array<i64: 128, 128>}, {pipeline_mode = #tpu.pipeline_mode<synchronous>, transform_indices = @transform_6, window_bounds = array<i64: 1, 128>}, {transform_indices = @transform_7, window_bounds = array<i64: 2, 128>}]} {
    %c0 = arith.constant 0 : index
    %c0_0 = arith.constant 0 : index
    %0 = vector.load %arg1[%c0, %c0_0] : memref<2x32xf32, #tpu.memory_space<vmem>>, vector<2x32xf32>
    %c0_1 = arith.constant 0 : index
    %c0_2 = arith.constant 0 : index
    %1 = vector.load %arg2[%c0_1, %c0_2] : memref<32x128xf32, #tpu.memory_space<vmem>>, vector<32x128xf32>
    %cst = arith.constant dense<0.000000e+00> : vector<2x128xf32>
    %2 = tpu.matmul %0, %1, %cst {dimension_numbers = #tpu.dot_dimension_numbers<[1], [0], [0], [1], [0, 0, 1, 1], [], []>} : vector<2x32xf32>, vector<32x128xf32>, vector<2x128xf32> -> vector<2x128xf32>
    %c0_3 = arith.constant 0 : index
    %c0_4 = arith.constant 0 : index
    %3 = vector.load %arg3[%c0_3, %c0_4] : memref<1x128xf32, #tpu.memory_space<vmem>>, vector<1x128xf32>
    %4 = vector.broadcast %3 : vector<1x128xf32> to vector<2x128xf32>
    %5 = arith.addf %2, %4 : vector<2x128xf32>
    %cst_5 = arith.constant 0.000000e+00 : f32
    %6 = vector.broadcast %cst_5 : f32 to vector<2x128xf32>
    %7 = arith.maximumf %5, %6 : vector<2x128xf32>
    %c0_6 = arith.constant 0 : index
    %c0_7 = arith.constant 0 : index
    %8 = vector.load %arg4[%c0_6, %c0_7] : memref<128x128xf32, #tpu.memory_space<vmem>>, vector<128x128xf32>
    %cst_8 = arith.constant dense<0.000000e+00> : vector<2x128xf32>
    %9 = tpu.matmul %7, %8, %cst_8 {dimension_numbers = #tpu.dot_dimension_numbers<[1], [0], [0], [1], [0, 0, 1, 1], [], []>} : vector<2x128xf32>, vector<128x128xf32>, vector<2x128xf32> -> vector<2x128xf32>
    %c0_9 = arith.constant 0 : index
    %c0_10 = arith.constant 0 : index
    %10 = vector.load %arg5[%c0_9, %c0_10] : memref<1x128xf32, #tpu.memory_space<vmem>>, vector<1x128xf32>
    %11 = vector.broadcast %10 : vector<1x128xf32> to vector<2x128xf32>
    %12 = arith.addf %9, %11 : vector<2x128xf32>
    %cst_11 = arith.constant 0.000000e+00 : f32
    %13 = vector.broadcast %cst_11 : f32 to vector<2x128xf32>
    %14 = arith.subf %13, %12 : vector<2x128xf32>
    %15 = math.exp %14 : vector<2x128xf32>
    %cst_12 = arith.constant 1.000000e+00 : f32
    %16 = vector.broadcast %cst_12 : f32 to vector<2x128xf32>
    %17 = arith.addf %16, %15 : vector<2x128xf32>
    %18 = tpu.reciprocal %17 : vector<2x128xf32> -> vector<2x128xf32>
    %c0_13 = arith.constant 0 : index
    %c0_14 = arith.constant 0 : index
    %19 = vector.load %arg6[%c0_13, %c0_14] : memref<128x128xf32, #tpu.memory_space<vmem>>, vector<128x128xf32>
    %cst_15 = arith.constant dense<0.000000e+00> : vector<2x128xf32>
    %20 = tpu.matmul %18, %19, %cst_15 {dimension_numbers = #tpu.dot_dimension_numbers<[1], [0], [0], [1], [0, 0, 1, 1], [], []>} : vector<2x128xf32>, vector<128x128xf32>, vector<2x128xf32> -> vector<2x128xf32>
    %c0_16 = arith.constant 0 : index
    %c0_17 = arith.constant 0 : index
    %21 = vector.load %arg7[%c0_16, %c0_17] : memref<1x128xf32, #tpu.memory_space<vmem>>, vector<1x128xf32>
    %22 = vector.broadcast %21 : vector<1x128xf32> to vector<2x128xf32>
    %23 = arith.addf %20, %22 : vector<2x128xf32>
    %24 = arith.mulf %18, %23 : vector<2x128xf32>
    %c0_18 = arith.constant 0 : index
    %c0_19 = arith.constant 0 : index
    %25 = vector.load %arg8[%c0_18, %c0_19] : memref<2x128xf32, #tpu.memory_space<vmem>>, vector<2x128xf32>
    tpu.vector_store %arg8[%c0_18, %c0_19], %24 {strides = array<i32>} : memref<2x128xf32, #tpu.memory_space<vmem>>, vector<2x128xf32>,
    return
  }
  func.func @transform_0(%arg0: i32) -> (i32, i32) {
    %c0_i32 = arith.constant 0 : i32
    %c0_i32_0 = arith.constant 0 : i32
    return %arg0, %c0_i32 : i32, i32
  }
  func.func @transform_1(%arg0: i32) -> (i32, i32) {
    %c0_i32 = arith.constant 0 : i32
    %c0_i32_0 = arith.constant 0 : i32
    %c0_i32_1 = arith.constant 0 : i32
    return %c0_i32, %c0_i32_0 : i32, i32
  }
  func.func @transform_2(%arg0: i32) -> (i32, i32) {
    %c0_i32 = arith.constant 0 : i32
    %c0_i32_0 = arith.constant 0 : i32
    %c0_i32_1 = arith.constant 0 : i32
    return %c0_i32, %c0_i32_0 : i32, i32
  }
  func.func @transform_3(%arg0: i32) -> (i32, i32) {
    %c0_i32 = arith.constant 0 : i32
    %c0_i32_0 = arith.constant 0 : i32
    %c0_i32_1 = arith.constant 0 : i32
    return %c0_i32, %c0_i32_0 : i32, i32
  }
  func.func @transform_4(%arg0: i32) -> (i32, i32) {
    %c0_i32 = arith.constant 0 : i32
    %c0_i32_0 = arith.constant 0 : i32
    %c0_i32_1 = arith.constant 0 : i32
    return %c0_i32, %c0_i32_0 : i32, i32
  }
  func.func @transform_5(%arg0: i32) -> (i32, i32) {
    %c0_i32 = arith.constant 0 : i32
    %c0_i32_0 = arith.constant 0 : i32
    %c0_i32_1 = arith.constant 0 : i32
    return %c0_i32, %c0_i32_0 : i32, i32
  }
  func.func @transform_6(%arg0: i32) -> (i32, i32) {
    %c0_i32 = arith.constant 0 : i32
    %c0_i32_0 = arith.constant 0 : i32
    %c0_i32_1 = arith.constant 0 : i32
    return %c0_i32, %c0_i32_0 : i32, i32
  }
  func.func @transform_7(%arg0: i32) -> (i32, i32) {
    %c0_i32 = arith.constant 0 : i32
    %c0_i32_0 = arith.constant 0 : i32
    return %arg0, %c0_i32 : i32, i32
  }
}

</mosaic_0001>

<llo_original>
// kernel: mendt_forward.1
$region0: #{mendt_forward.1}
  #allocation0 [shape = 'u32[]', space=smem, size = 0x4, offset = 0x4, fixed_abs, tag = 'smem constant byte address 0x4 - core index']
  #allocation1 [shape = 'u32[144,128]{1,0:T(1,128)}', space=vmem, size = 0x12000, scoped, tag = 'internal scratch']
  %s0 = inlined_call_operand.hbm [shape: f32[2,32], index: 0, kind: input, shape index: {}]
  %s1 = inlined_call_operand.hbm [shape: f32[32,128], index: 1, kind: input, shape index: {}]
  %s2 = inlined_call_operand.vmem [shape: f32[1,128], index: 2, kind: input, shape index: {}]
  %s3 = inlined_call_operand.hbm [shape: f32[128,128], index: 3, kind: input, shape index: {}]
  %s4 = inlined_call_operand.vmem [shape: f32[1,128], index: 4, kind: input, shape index: {}]
  %s5 = inlined_call_operand.hbm [shape: f32[128,128], index: 5, kind: input, shape index: {}]
  %s6 = inlined_call_operand.vmem [shape: f32[1,128], index: 6, kind: input, shape index: {}]
  %s7 = inlined_call_operand.vmem [shape: f32[2,128], index: 7, kind: output, shape index: {}]
  %s8 = sld [smem:[#allocation0]]
  $region54: #{mendt_forward.1} parent=0
    _
  %s10 = ssub.s32 1, %s8
  %s11 = scalar_select 0, %s10, %s8
  $region1: #{mendt_forward.1} parent=0
    #allocation2 [shape = 'u8[1024]{0}', space=vmem, size = 0x400, scoped, tag = 'input window, operand 0, single buffered']
    #allocation3 [shape = 's32[1]{0}', space=sflag, size = 0x4, scoped, tag = 'scoped memory for mendt_forward.1']
    #allocation4 [shape = 'u8[16384]{0}', space=vmem, size = 0x4000, scoped, tag = 'input window, operand 1, single buffered']
    #allocation5 [shape = 's32[1]{0}', space=sflag, size = 0x4, scoped, tag = 'scoped memory for mendt_forward.1']
    #allocation6 [shape = 'u8[65536]{0}', space=vmem, size = 0x10000, scoped, tag = 'input window, operand 3, single buffered']
    #allocation7 [shape = 'u8[65536]{0}', space=vmem, size = 0x10000, scoped, tag = 'input window, operand 5, single buffered']
    #allocation8 [shape = 's32[1]{0}', space=sflag, size = 0x4, scoped, tag = 'scoped memory for mendt_forward.1']
    %12 = vsyncpa [#allocation3], 0
    %13 = vsyncpa [#allocation5], 0
    %14 = vsyncpa [#allocation8], 0
    // Predicated region
    $region2: #{mendt_forward.1} parent=1 // pred_check
      _
    $region3: #{mendt_forward.1} parent=1 // pred_check_branch
      %16 = sbr.rel (0) target = $region5
    $region4: #{mendt_forward.1} parent=1 // pred_region
      %s18 = ssub.s32 32, 32
      %19 = vsyncadd [#allocation3], %s18
      %s21 = sshll.u32 [#allocation2], 4
      %s22 = int_to_ptr.vmem [resolvable:$true] %s21
      %24 = dma.hbm_to_vmem [thread:$0]  %s0, 32, %s22, [#allocation3]
    $region5: #{mendt_forward.1} parent=1 // pred_fallthru
      _
    // Predicated region
    $region6: #{mendt_forward.1} parent=1 // pred_check
      _
    $region7: #{mendt_forward.1} parent=1 // pred_check_branch
      %26 = sbr.rel (0) target = $region9
    $region8: #{mendt_forward.1} parent=1 // pred_region
      %s28 = ssub.s32 512, 512
      %29 = vsyncadd [#allocation5], %s28
      %s30 = sshll.u32 [#allocation4], 4
      %s31 = int_to_ptr.vmem [resolvable:$true] %s30
      %36 = dma.hbm_to_vmem [thread:$0]  %s1, 512, %s31, [#allocation5], 128, 128, 8
    $region9: #{mendt_forward.1} parent=1 // pred_fallthru
      _
    // Predicated region
    $region10: #{mendt_forward.1} parent=1 // pred_check
      _
    $region11: #{mendt_forward.1} parent=1 // pred_check_branch
      %38 = sbr.rel (0) target = $region13
    $region12: #{mendt_forward.1} parent=1 // pred_region
      _
    $region13: #{mendt_forward.1} parent=1 // pred_fallthru
      _
    // Predicated region
    $region14: #{mendt_forward.1} parent=1 // pred_check
      _
    $region15: #{mendt_forward.1} parent=1 // pred_check_branch
      %40 = sbr.rel (0) target = $region17
    $region16: #{mendt_forward.1} parent=1 // pred_region
      %s42 = ssub.s32 2048, 2048
      %43 = vsyncadd [#allocation5], %s42
      %s44 = sshll.u32 [#allocation6], 4
      %s45 = int_to_ptr.vmem [resolvable:$true] %s44
      %50 = dma.hbm_to_vmem [thread:$0]  %s3, 2048, %s45, [#allocation5], 128, 128, 8
    $region17: #{mendt_forward.1} parent=1 // pred_fallthru
      _
    // Predicated region
    $region18: #{mendt_forward.1} parent=1 // pred_check
      _
    $region19: #{mendt_forward.1} parent=1 // pred_check_branch
      %52 = sbr.rel (0) target = $region21
    $region20: #{mendt_forward.1} parent=1 // pred_region
      _
    $region21: #{mendt_forward.1} parent=1 // pred_fallthru
      _
    // Predicated region
    $region22: #{mendt_forward.1} parent=1 // pred_check
      _
    $region23: #{mendt_forward.1} parent=1 // pred_check_branch
      %54 = sbr.rel (0) target = $region25
    $region24: #{mendt_forward.1} parent=1 // pred_region
      %s56 = ssub.s32 2048, 2048
      %57 = vsyncadd [#allocation8], %s56
      %s58 = sshll.u32 [#allocation7], 4
      %s59 = int_to_ptr.vmem [resolvable:$true] %s58
      %64 = dma.hbm_to_vmem [thread:$0]  %s5, 2048, %s59, [#allocation8], 128, 128, 8
    $region25: #{mendt_forward.1} parent=1 // pred_fallthru
      _
    // Predicated region
    $region26: #{mendt_forward.1} parent=1 // pred_check
      _
    $region27: #{mendt_forward.1} parent=1 // pred_check_branch
      %66 = sbr.rel (0) target = $region29
    $region28: #{mendt_forward.1} parent=1 // pred_region
      _
    $region29: #{mendt_forward.1} parent=1 // pred_fallthru
      _
    // Predicated region
    $region30: #{mendt_forward.1} parent=1 // pred_check
      _
    $region31: #{mendt_forward.1} parent=1 // pred_check_branch
      %68 = sbr.rel (0) target = $region33
    $region32: #{mendt_forward.1} parent=1 // pred_region
      %69 = dma.done [#allocation3], 32
    $region33: #{mendt_forward.1} parent=1 // pred_fallthru
      _
    // Predicated region
    $region34: #{mendt_forward.1} parent=1 // pred_check
      _
    $region35: #{mendt_forward.1} parent=1 // pred_check_branch
      %71 = sbr.rel (0) target = $region37
    $region36: #{mendt_forward.1} parent=1 // pred_region
      %72 = dma.done [#allocation5], 512
    $region37: #{mendt_forward.1} parent=1 // pred_fallthru
      _
    // Predicated region
    $region38: #{mendt_forward.1} parent=1 // pred_check
      _
    $region39: #{mendt_forward.1} parent=1 // pred_check_branch
      %74 = sbr.rel (0) target = $region41
    $region40: #{mendt_forward.1} parent=1 // pred_region
      %75 = dma.done [#allocation5], 2048
    $region41: #{mendt_forward.1} parent=1 // pred_fallthru
      _
    // Predicated region
    $region42: #{mendt_forward.1} parent=1 // pred_check
      _
    $region43: #{mendt_forward.1} parent=1 // pred_check_branch
      %77 = sbr.rel (0) target = $region45
    $region44: #{mendt_forward.1} parent=1 // pred_region
      %78 = dma.done [#allocation8], 2048
    $region45: #{mendt_forward.1} parent=1 // pred_fallthru
      _
    %v79 = vld [vmem:[#allocation2] sm:$0x3]
    %v80 = vld [vmem:[#allocation4] sm:$0xff]
    %v81 = vld [vmem:[#allocation4 + $0x8] sm:$0xff]
    %v82 = vld [vmem:[#allocation4 + $0x10] sm:$0xff]
    %v83 = vld [vmem:[#allocation4 + $0x18] sm:$0xff]
    %v84 = vld [vmem:[%s2] sm:$0x1]
    %v86 = vlaneseq
    %v87 = vshrl.u32 %v86, 7
    %v88 = vsub.s32 0, %v87
    %v89 = vrot.slane %v84, %v88
    %vm91 = vcmask 261120
    %v93 = vsel %vm91, %v79, 0
    %95 = vmatprep.subr.mxu0 0.0
    %96 = vmatpush1.msra.mxu0 0.0
    %97 = vmatprep.subr.mxu0 0.0
    %98 = vmatpush1.msra.mxu0 0.0
    %99 = vmatprep.subr.mxu0 0.0
    %100 = vmatpush1.msra.mxu0 0.0
    %101 = vmatprep.subr.mxu0 0.0
    %102 = vmatpush1.msra.mxu0 0.0
    %103 = vmatprep.subr.mxu0 0.0
    %104 = vmatpush1.msra.mxu0 0.0
    %105 = vmatprep.subr.mxu0 0.0
    %106 = vmatpush1.msra.mxu0 0.0
    %107 = vmatprep.subr.mxu0 0.0
    %108 = vmatpush1.msra.mxu0 0.0
    %109 = vmatprep.subr.mxu0 0.0
    %110 = vmatpush1.msra.mxu0 0.0
    %111 = vmatprep.subr.mxu0 0.0
    %112 = vmatpush1.msra.mxu0 0.0
    %113 = vmatprep.subr.mxu0 0.0
    %114 = vmatpush1.msra.mxu0 0.0
    %115 = vmatprep.subr.mxu0 0.0
    %116 = vmatpush1.msra.mxu0 0.0
    %117 = vmatprep.subr.mxu0 0.0
    %118 = vmatpush1.msra.mxu0 0.0
    %119 = vmatprep.subr.mxu0 0.0
    %120 = vmatpush1.msra.mxu0 %v83
    %121 = vmatprep.subr.mxu0 0.0
    %122 = vmatpush1.msra.mxu0 %v82
    %123 = vmatprep.subr.mxu0 0.0
    %124 = vmatpush1.msra.mxu0 %v81
    %125 = vmatprep.subr.mxu0 0.0
    %126 = vmatpush1.msra.mxu0 %v80
    %127 = vmatprep.subr.mxu0 0.0
    %128 = vmatpush2.msra.mxu0 0.0
    %129 = vmatprep.subr.mxu0 0.0
    %130 = vmatpush2.msra.mxu0 0.0
    %131 = vmatprep.subr.mxu0 0.0
    %132 = vmatpush2.msra.mxu0 0.0
    %133 = vmatprep.subr.mxu0 0.0
    %134 = vmatpush2.msra.mxu0 0.0
    %135 = vmatprep.subr.mxu0 0.0
    %136 = vmatpush2.msra.mxu0 0.0
    %137 = vmatprep.subr.mxu0 0.0
    %138 = vmatpush2.msra.mxu0 0.0
    %139 = vmatprep.subr.mxu0 0.0
    %140 = vmatpush2.msra.mxu0 0.0
    %141 = vmatprep.subr.mxu0 0.0
    %142 = vmatpush2.msra.mxu0 0.0
    %143 = vmatprep.subr.mxu0 0.0
    %144 = vmatpush2.msra.mxu0 0.0
    %145 = vmatprep.subr.mxu0 0.0
    %146 = vmatpush2.msra.mxu0 0.0
    %147 = vmatprep.subr.mxu0 0.0
    %148 = vmatpush2.msra.mxu0 0.0
    %149 = vmatprep.subr.mxu0 0.0
    %150 = vmatpush2.msra.mxu0 0.0
    %151 = vmatprep.subr.mxu0 0.0
    %152 = vmatpush2.msra.mxu0 0.0
    %153 = vmatprep.subr.mxu0 0.0
    %154 = vmatpush2.msra.mxu0 0.0
    %155 = vmatprep.subr.mxu0 0.0
    %156 = vmatpush2.msra.mxu0 0.0
    %157 = vmatprep.subr.mxu0 0.0
    %158 = vmatpush2.msra.mxu0 0.0
    %159 = vmatprep.mubr.f32.mxu0 0.0
    %160 = vmatmul.mubr.f32.gmra.mxu0 %v93
    %v161 = vpop.f32.mrf.mxu0
    %v162 = vadd.f32 %v89, %v161
    %v163 = vpop.f32.mrf.mxu0
    %164 = vdwg.mxu0
    %v165 = vmax.f32 %v162, 0.0
    %v166 = vld [vmem:[#allocation6] sm:$0xff]
    %v167 = vld [vmem:[#allocation6 + $0x8] sm:$0xff]
    %v168 = vld [vmem:[#allocation6 + $0x10] sm:$0xff]
    %v169 = vld [vmem:[#allocation6 + $0x18] sm:$0xff]
    %v170 = vld [vmem:[#allocation6 + $0x20] sm:$0xff]
    %v171 = vld [vmem:[#allocation6 + $0x28] sm:$0xff]
    %v172 = vld [vmem:[#allocation6 + $0x30] sm:$0xff]
    %v173 = vld [vmem:[#allocation6 + $0x38] sm:$0xff]
    %v174 = vld [vmem:[#allocation6 + $0x40] sm:$0xff]
    %v175 = vld [vmem:[#allocation6 + $0x48] sm:$0xff]
    %v176 = vld [vmem:[#allocation6 + $0x50] sm:$0xff]
    %v177 = vld [vmem:[#allocation6 + $0x58] sm:$0xff]
    %v178 = vld [vmem:[#allocation6 + $0x60] sm:$0xff]
    %v179 = vld [vmem:[#allocation6 + $0x68] sm:$0xff]
    %v180 = vld [vmem:[#allocation6 + $0x70] sm:$0xff]
    %v181 = vld [vmem:[#allocation6 + $0x78] sm:$0xff]
    %v182 = vld [vmem:[%s4] sm:$0x1]
    %v184 = vlaneseq
    %v185 = vshrl.u32 %v184, 7
    %v186 = vsub.s32 0, %v185
    %v187 = vrot.slane %v182, %v186
    %189 = vmatprep.subr.mxu0 0.0
    %190 = vmatpush1.msra.mxu0 %v181
    %191 = vmatprep.subr.mxu0 0.0
    %192 = vmatpush1.msra.mxu0 %v180
    %193 = vmatprep.subr.mxu0 0.0
    %194 = vmatpush1.msra.mxu0 %v179
    %195 = vmatprep.subr.mxu0 0.0
    %196 = vmatpush1.msra.mxu0 %v178
    %197 = vmatprep.subr.mxu0 0.0
    %198 = vmatpush1.msra.mxu0 %v177
    %199 = vmatprep.subr.mxu0 0.0
    %200 = vmatpush1.msra.mxu0 %v176
    %201 = vmatprep.subr.mxu0 0.0
    %202 = vmatpush1.msra.mxu0 %v175
    %203 = vmatprep.subr.mxu0 0.0
    %204 = vmatpush1.msra.mxu0 %v174
    %205 = vmatprep.subr.mxu0 0.0
    %206 = vmatpush1.msra.mxu0 %v173
    %207 = vmatprep.subr.mxu0 0.0
    %208 = vmatpush1.msra.mxu0 %v172
    %209 = vmatprep.subr.mxu0 0.0
    %210 = vmatpush1.msra.mxu0 %v171
    %211 = vmatprep.subr.mxu0 0.0
    %212 = vmatpush1.msra.mxu0 %v170
    %213 = vmatprep.subr.mxu0 0.0
    %214 = vmatpush1.msra.mxu0 %v169
    %215 = vmatprep.subr.mxu0 0.0
    %216 = vmatpush1.msra.mxu0 %v168
    %217 = vmatprep.subr.mxu0 0.0
    %218 = vmatpush1.msra.mxu0 %v167
    %219 = vmatprep.subr.mxu0 0.0
    %220 = vmatpush1.msra.mxu0 %v166
    %221 = vmatprep.subr.mxu0 0.0
    %222 = vmatpush2.msra.mxu0 0.0
    %223 = vmatprep.subr.mxu0 0.0
    %224 = vmatpush2.msra.mxu0 0.0
    %225 = vmatprep.subr.mxu0 0.0
    %226 = vmatpush2.msra.mxu0 0.0
    %227 = vmatprep.subr.mxu0 0.0
    %228 = vmatpush2.msra.mxu0 0.0
    %229 = vmatprep.subr.mxu0 0.0
    %230 = vmatpush2.msra.mxu0 0.0
    %231 = vmatprep.subr.mxu0 0.0
    %232 = vmatpush2.msra.mxu0 0.0
    %233 = vmatprep.subr.mxu0 0.0
    %234 = vmatpush2.msra.mxu0 0.0
    %235 = vmatprep.subr.mxu0 0.0
    %236 = vmatpush2.msra.mxu0 0.0
    %237 = vmatprep.subr.mxu0 0.0
    %238 = vmatpush2.msra.mxu0 0.0
    %239 = vmatprep.subr.mxu0 0.0
    %240 = vmatpush2.msra.mxu0 0.0
    %241 = vmatprep.subr.mxu0 0.0
    %242 = vmatpush2.msra.mxu0 0.0
    %243 = vmatprep.subr.mxu0 0.0
    %244 = vmatpush2.msra.mxu0 0.0
    %245 = vmatprep.subr.mxu0 0.0
    %246 = vmatpush2.msra.mxu0 0.0
    %247 = vmatprep.subr.mxu0 0.0
    %248 = vmatpush2.msra.mxu0 0.0
    %249 = vmatprep.subr.mxu0 0.0
    %250 = vmatpush2.msra.mxu0 0.0
    %251 = vmatprep.subr.mxu0 0.0
    %252 = vmatpush2.msra.mxu0 0.0
    %253 = vmatprep.mubr.f32.mxu0 0.0
    %254 = vmatmul.mubr.f32.gmra.mxu0 %v165
    %v255 = vpop.f32.mrf.mxu0
    %v256 = vadd.f32 %v187, %v255
    %v257 = vpop.f32.mrf.mxu0
    %258 = vdwg.mxu0
    %v259 = vsub.f32 0.0, %v256
    %v260 = vmul.f32 %v259, 1.442695
    %v261 = vpow.pop %v260
    %v262 = vadd.f32 %v261, 1.0
    %v263 = vrcp.pop %v262
    %v264 = vld [vmem:[#allocation7] sm:$0xff]
    %v265 = vld [vmem:[#allocation7 + $0x8] sm:$0xff]
    %v266 = vld [vmem:[#allocation7 + $0x10] sm:$0xff]
    %v267 = vld [vmem:[#allocation7 + $0x18] sm:$0xff]
    %v268 = vld [vmem:[#allocation7 + $0x20] sm:$0xff]
    %v269 = vld [vmem:[#allocation7 + $0x28] sm:$0xff]
    %v270 = vld [vmem:[#allocation7 + $0x30] sm:$0xff]
    %v271 = vld [vmem:[#allocation7 + $0x38] sm:$0xff]
    %v272 = vld [vmem:[#allocation7 + $0x40] sm:$0xff]
    %v273 = vld [vmem:[#allocation7 + $0x48] sm:$0xff]
    %v274 = vld [vmem:[#allocation7 + $0x50] sm:$0xff]
    %v275 = vld [vmem:[#allocation7 + $0x58] sm:$0xff]
    %v276 = vld [vmem:[#allocation7 + $0x60] sm:$0xff]
    %v277 = vld [vmem:[#allocation7 + $0x68] sm:$0xff]
    %v278 = vld [vmem:[#allocation7 + $0x70] sm:$0xff]
    %v279 = vld [vmem:[#allocation7 + $0x78] sm:$0xff]
    %v280 = vld [vmem:[%s6] sm:$0x1]
    %v282 = vlaneseq
    %v283 = vshrl.u32 %v282, 7
    %v284 = vsub.s32 0, %v283
    %v285 = vrot.slane %v280, %v284
    %287 = vmatprep.subr.mxu0 0.0
    %288 = vmatpush1.msra.mxu0 %v279
    %289 = vmatprep.subr.mxu0 0.0
    %290 = vmatpush1.msra.mxu0 %v278
    %291 = vmatprep.subr.mxu0 0.0
    %292 = vmatpush1.msra.mxu0 %v277
    %293 = vmatprep.subr.mxu0 0.0
    %294 = vmatpush1.msra.mxu0 %v276
    %295 = vmatprep.subr.mxu0 0.0
    %296 = vmatpush1.msra.mxu0 %v275
    %297 = vmatprep.subr.mxu0 0.0
    %298 = vmatpush1.msra.mxu0 %v274
    %299 = vmatprep.subr.mxu0 0.0
    %300 = vmatpush1.msra.mxu0 %v273
    %301 = vmatprep.subr.mxu0 0.0
    %302 = vmatpush1.msra.mxu0 %v272
    %303 = vmatprep.subr.mxu0 0.0
    %304 = vmatpush1.msra.mxu0 %v271
    %305 = vmatprep.subr.mxu0 0.0
    %306 = vmatpush1.msra.mxu0 %v270
    %307 = vmatprep.subr.mxu0 0.0
    %308 = vmatpush1.msra.mxu0 %v269
    %309 = vmatprep.subr.mxu0 0.0
    %310 = vmatpush1.msra.mxu0 %v268
    %311 = vmatprep.subr.mxu0 0.0
    %312 = vmatpush1.msra.mxu0 %v267
    %313 = vmatprep.subr.mxu0 0.0
    %314 = vmatpush1.msra.mxu0 %v266
    %315 = vmatprep.subr.mxu0 0.0
    %316 = vmatpush1.msra.mxu0 %v265
    %317 = vmatprep.subr.mxu0 0.0
    %318 = vmatpush1.msra.mxu0 %v264
    %319 = vmatprep.subr.mxu0 0.0
    %320 = vmatpush2.msra.mxu0 0.0
    %321 = vmatprep.subr.mxu0 0.0
    %322 = vmatpush2.msra.mxu0 0.0
    %323 = vmatprep.subr.mxu0 0.0
    %324 = vmatpush2.msra.mxu0 0.0
    %325 = vmatprep.subr.mxu0 0.0
    %326 = vmatpush2.msra.mxu0 0.0
    %327 = vmatprep.subr.mxu0 0.0
    %328 = vmatpush2.msra.mxu0 0.0
    %329 = vmatprep.subr.mxu0 0.0
    %330 = vmatpush2.msra.mxu0 0.0
    %331 = vmatprep.subr.mxu0 0.0
    %332 = vmatpush2.msra.mxu0 0.0
    %333 = vmatprep.subr.mxu0 0.0
    %334 = vmatpush2.msra.mxu0 0.0
    %335 = vmatprep.subr.mxu0 0.0
    %336 = vmatpush2.msra.mxu0 0.0
    %337 = vmatprep.subr.mxu0 0.0
    %338 = vmatpush2.msra.mxu0 0.0
    %339 = vmatprep.subr.mxu0 0.0
    %340 = vmatpush2.msra.mxu0 0.0
    %341 = vmatprep.subr.mxu0 0.0
    %342 = vmatpush2.msra.mxu0 0.0
    %343 = vmatprep.subr.mxu0 0.0
    %344 = vmatpush2.msra.mxu0 0.0
    %345 = vmatprep.subr.mxu0 0.0
    %346 = vmatpush2.msra.mxu0 0.0
    %347 = vmatprep.subr.mxu0 0.0
    %348 = vmatpush2.msra.mxu0 0.0
    %349 = vmatprep.subr.mxu0 0.0
    %350 = vmatpush2.msra.mxu0 0.0
    %351 = vmatprep.mubr.f32.mxu0 0.0
    %352 = vmatmul.mubr.f32.gmra.mxu0 %v263
    %v353 = vpop.f32.mrf.mxu0
    %v354 = vadd.f32 %v285, %v353
    %v355 = vpop.f32.mrf.mxu0
    %356 = vdwg.mxu0
    %v357 = vmul.f32 %v263, %v354
    %358 = vst [vmem:[%s7] sm:$0x3] %v357
    // Predicated region
    $region46: #{mendt_forward.1} parent=1 // pred_check
      _
    $region47: #{mendt_forward.1} parent=1 // pred_check_branch
      %360 = sbr.rel (0) target = $region49
    $region48: #{mendt_forward.1} parent=1 // pred_region
      _
    $region49: #{mendt_forward.1} parent=1 // pred_fallthru
      _
    // Predicated region
    $region50: #{mendt_forward.1} parent=1 // pred_check
      _
    $region51: #{mendt_forward.1} parent=1 // pred_check_branch
      %362 = sbr.rel (0) target = $region53
    $region52: #{mendt_forward.1} parent=1 // pred_region
      _
    $region53: #{mendt_forward.1} parent=1 // pred_fallthru
      _
    %363 = vsyncpa [#allocation3], 1
    %364 = vsyncpa [#allocation5], 1
    %365 = vsyncpa [#allocation8], 1

</llo_original>
